<compile_context>
chip_gen: v7x
topology: tpu7x:2x2x1
jax: 0.10.0
libtpu: 0.0.40
codegen_flags: <defaults>
</compile_context>

<pallas_src>
import jax
import jax.numpy as jnp
from jax.experimental import pallas as pl
from jax.experimental.pallas import tpu as pltpu

INPUT_SIZE = 20 * 20          # 400
MID_SIZE = INPUT_SIZE // 2    # 200
NUM_CLASSES = 10
LANES = 128                   # pad class dim to one full lane register
NEG_PAD = -1e30               # bias for padded classes: never wins the max,
                              # exp() underflows to 0 in the logsumexp
TM_MAX = 2048                 # batch tile; ~9 MiB double-buffered footprint


def _round_up(n, m):
    return ((n + m - 1) // m) * m


def perceptron_kernel(x_ref, w_ref, b_ref, o_ref):
    # x_ref: (TM, 400) f32   w_ref: (400, 128) bf16   b_ref: (1, 128) f32
    # o_ref: (TM, 128) f32
    # In-kernel bf16 cast of x (VPU, hidden under DMA); bf16 MXU operands,
    # f32 accumulation.
    x_bf = x_ref[...].astype(jnp.bfloat16)
    logits = jnp.dot(x_bf, w_ref[...],
                     preferred_element_type=jnp.float32) + b_ref[...]

    # log_softmax over the padded class axis.  Padded columns carry NEG_PAD
    # bias -> never affect the max and contribute exp() == 0 to the sum.
    m = jnp.max(logits, axis=1, keepdims=True)
    shifted = logits - m
    lse = jnp.log(jnp.sum(jnp.exp(shifted), axis=1, keepdims=True))
    o_ref[...] = shifted - lse


def fold_params(w1, b1, w2, b2):
    """One-time (per weight update) fold + lane padding + bf16 cast.

    Hoisted out of the per-call path so repeated forwards pay nothing for it.
    Valid because the original module has no nonlinearity between fc1 and fc2.
    """
    wf = w1 @ w2                    # (400, 10)
    bfold = b1 @ w2 + b2            # (1, 10)
    wf_p = jnp.zeros((INPUT_SIZE, LANES), jnp.float32).at[:, :NUM_CLASSES].set(wf)
    bf_p = jnp.full((1, LANES), NEG_PAD, jnp.float32).at[:, :NUM_CLASSES].set(bfold)
    return wf_p.astype(jnp.bfloat16), bf_p


def perceptron_forward(x, wf_bf, bf_p):
    # Flatten like x.view(-1, 20*20); keep f32 -> cast to bf16 inside kernel.
    x2d = x.reshape(-1, INPUT_SIZE).astype(jnp.float32)
    B = x2d.shape[0]

    # f32 x only needs sublane-8 batch padding.  Cap TM so the grid has >=2
    # steps whenever the batch allows it (v7x megacore sharding of "parallel").
    Bp = _round_up(max(B, 1), 8)
    TM = min(TM_MAX, _round_up(pl.cdiv(Bp, 2), 8))
    TM = max(TM, 8)
    Bp = _round_up(Bp, TM)
    x_p = jnp.zeros((Bp, INPUT_SIZE), jnp.float32).at[:B].set(x2d)

    grid = (Bp // TM,)
    cost = pl.CostEstimate(
        flops=2 * Bp * INPUT_SIZE * LANES,
        transcendentals=Bp * LANES,
        bytes_accessed=(x_p.size * 4 + wf_bf.size * 2
                        + bf_p.size * 4 + Bp * LANES * 4),
    )

    out = pl.pallas_call(
        perceptron_kernel,
        out_shape=jax.ShapeDtypeStruct((Bp, LANES), jnp.float32),
        grid=grid,
        in_specs=[
            pl.BlockSpec((TM, INPUT_SIZE), lambda i: (i, 0)),      # x: batch-tiled
            pl.BlockSpec((INPUT_SIZE, LANES), lambda i: (0, 0)),   # Wf: VMEM-resident
            pl.BlockSpec((1, LANES), lambda i: (0, 0)),            # bf: VMEM-resident
        ],
        out_specs=pl.BlockSpec((TM, LANES), lambda i: (i, 0)),
        compiler_params=pltpu.CompilerParams(
            dimension_semantics=("parallel",),   # megacore batch sharding (v7x)
        ),
        cost_estimate=cost,
    )(x_p, wf_bf, bf_p)

    # Drop batch padding and padded class lanes -> exact module output shape.
    return out[:B, :NUM_CLASSES]


def init_params(key):
    # Deterministic synthetic init (shapes match nn.Linear(400,200)/(200,10)),
    # stored transposed (in, out) so the math is x @ W + b.
    k1, k2, k3, k4 = jax.random.split(key, 4)
    w1 = jax.random.normal(k1, (INPUT_SIZE, MID_SIZE), jnp.float32) * (1.0 / INPUT_SIZE**0.5)
    b1 = jax.random.normal(k2, (1, MID_SIZE), jnp.float32) * 0.01
    w2 = jax.random.normal(k3, (MID_SIZE, NUM_CLASSES), jnp.float32) * (1.0 / MID_SIZE**0.5)
    b2 = jax.random.normal(k4, (1, NUM_CLASSES), jnp.float32) * 0.01
    return w1, b1, w2, b2


def reference_forward_f32(x, w1, b1, w2, b2):
    # Pure fp32 reference of the original module's math.
    x2d = x.reshape(-1, INPUT_SIZE).astype(jnp.float32)
    logits = (x2d @ w1 + b1) @ w2 + b2
    return jax.nn.log_softmax(logits, axis=1)


def reference_forward_bf16(x, w1, b1, w2, b2):
    # Reference mirroring the kernel's bf16 MXU operands (f32 accumulate),
    # used for the tight correctness check of the kernel itself.
    x2d = x.reshape(-1, INPUT_SIZE).astype(jnp.float32)
    wf = w1 @ w2
    bfold = b1 @ w2 + b2
    logits = (x2d.astype(jnp.bfloat16).astype(jnp.float32)
              @ wf.astype(jnp.bfloat16).astype(jnp.float32)) + bfold
    return jax.nn.log_softmax(logits, axis=1)


if __name__ == "__main__":
    key = jax.random.PRNGKey(0)
    kx, kp = jax.random.split(key)

    # Small NCHW input consistent with x.view(-1, 20*20): (B, 1, 20, 20)
    x = jax.random.normal(kx, (8, 1, 20, 20), jnp.float32)
    w1, b1, w2, b2 = init_params(kp)

    # One-time fold/pad/cast (per-call path only pads x and launches the kernel).
    wf_bf, bf_p = fold_params(w1, b1, w2, b2)

    out = perceptron_forward(x, wf_bf, bf_p)
    out = jax.block_until_ready(out)
    assert out.shape == (8, NUM_CLASSES)

    # Tight check vs a reference using the same bf16 operand quantization.
    ref_bf16 = reference_forward_bf16(x, w1, b1, w2, b2)
    assert jnp.allclose(out, ref_bf16, atol=2e-3, rtol=2e-3)

    # Loose check vs the exact fp32 module math (bf16 MXU operands -> small drift).
    ref_f32 = reference_forward_f32(x, w1, b1, w2, b2)
    assert jnp.allclose(out, ref_f32, atol=5e-2, rtol=5e-2)

    print("KERNEL_OK")
</pallas_src>

<mosaic_0001>
module attributes {stable_mosaic.version = 11 : i64} {
  func.func @perceptron_kernel(%arg0: i32, %arg1: memref<8x400xf32, #tpu.memory_space<vmem>>, %arg2: memref<400x128xbf16, #tpu.memory_space<vmem>>, %arg3: memref<1x128xf32, #tpu.memory_space<vmem>>, %arg4: memref<8x128xf32, #tpu.memory_space<vmem>>) attributes {dimension_semantics = [#tpu.dimension_semantics<parallel>], iteration_bounds = array<i64: 1>, scalar_prefetch = 0 : i64, scratch_operands = 0 : i64, tpu.core_type = #tpu.core_type<tc>, window_params = [{transform_indices = @transform_0, window_bounds = array<i64: 8, 400>}, {pipeline_mode = #tpu.pipeline_mode<synchronous>, transform_indices = @transform_1, window_bounds = array<i64: 400, 128>}, {pipeline_mode = #tpu.pipeline_mode<synchronous>, transform_indices = @transform_2, window_bounds = array<i64: 1, 128>}, {transform_indices = @transform_3, window_bounds = array<i64: 8, 128>}]} {
    %c0 = arith.constant 0 : index
    %c0_0 = arith.constant 0 : index
    %0 = vector.load %arg1[%c0, %c0_0] : memref<8x400xf32, #tpu.memory_space<vmem>>, vector<8x400xf32>
    %1 = arith.truncf %0 : vector<8x400xf32> to vector<8x400xbf16>
    %c0_1 = arith.constant 0 : index
    %c0_2 = arith.constant 0 : index
    %2 = vector.load %arg2[%c0_1, %c0_2] : memref<400x128xbf16, #tpu.memory_space<vmem>>, vector<400x128xbf16>
    %cst = arith.constant dense<0.000000e+00> : vector<8x128xf32>
    %3 = tpu.matmul %1, %2, %cst {dimension_numbers = #tpu.dot_dimension_numbers<[1], [0], [0], [1], [0, 0, 1, 1], [], []>} : vector<8x400xbf16>, vector<400x128xbf16>, vector<8x128xf32> -> vector<8x128xf32>
    %c0_3 = arith.constant 0 : index
    %c0_4 = arith.constant 0 : index
    %4 = vector.load %arg3[%c0_3, %c0_4] : memref<1x128xf32, #tpu.memory_space<vmem>>, vector<1x128xf32>
    %5 = vector.broadcast %4 : vector<1x128xf32> to vector<8x128xf32>
    %6 = arith.addf %3, %5 : vector<8x128xf32>
    %cst_5 = arith.constant dense<0xFF800000> : vector<8xf32>
    %7 = vector.multi_reduction <maximumf>, %6, %cst_5 [1] : vector<8x128xf32> to vector<8xf32>
    %8 = vector.shape_cast %7 : vector<8xf32> to vector<8x1xf32>
    %9 = vector.broadcast %8 : vector<8x1xf32> to vector<8x128xf32>
    %10 = arith.subf %6, %9 : vector<8x128xf32>
    %11 = math.exp %10 : vector<8x128xf32>
    %cst_6 = arith.constant dense<0.000000e+00> : vector<8xf32>
    %12 = vector.multi_reduction <add>, %11, %cst_6 [1] : vector<8x128xf32> to vector<8xf32>
    %13 = vector.shape_cast %12 : vector<8xf32> to vector<8x1xf32>
    %14 = math.log %13 : vector<8x1xf32>
    %15 = vector.broadcast %14 : vector<8x1xf32> to vector<8x128xf32>
    %16 = arith.subf %10, %15 : vector<8x128xf32>
    %c0_7 = arith.constant 0 : index
    %c0_8 = arith.constant 0 : index
    %17 = vector.load %arg4[%c0_7, %c0_8] : memref<8x128xf32, #tpu.memory_space<vmem>>, vector<8x128xf32>
    tpu.vector_store %arg4[%c0_7, %c0_8], %16 {strides = array<i32>} : memref<8x128xf32, #tpu.memory_space<vmem>>, vector<8x128xf32>,
    return
  }
  func.func @transform_0(%arg0: i32) -> (i32, i32) {
    %c0_i32 = arith.constant 0 : i32
    %c0_i32_0 = arith.constant 0 : i32
    return %arg0, %c0_i32 : i32, i32
  }
  func.func @transform_1(%arg0: i32) -> (i32, i32) {
    %c0_i32 = arith.constant 0 : i32
    %c0_i32_0 = arith.constant 0 : i32
    %c0_i32_1 = arith.constant 0 : i32
    return %c0_i32, %c0_i32_0 : i32, i32
  }
  func.func @transform_2(%arg0: i32) -> (i32, i32) {
    %c0_i32 = arith.constant 0 : i32
    %c0_i32_0 = arith.constant 0 : i32
    %c0_i32_1 = arith.constant 0 : i32
    return %c0_i32, %c0_i32_0 : i32, i32
  }
  func.func @transform_3(%arg0: i32) -> (i32, i32) {
    %c0_i32 = arith.constant 0 : i32
    %c0_i32_0 = arith.constant 0 : i32
    return %arg0, %c0_i32 : i32, i32
  }
}

</mosaic_0001>

<llo_original>
// kernel: tpu_custom_call.1
$region0: #{tpu_custom_call.1}
  #allocation0 [shape = 'u32[]', space=smem, size = 0x4, offset = 0x4, fixed_abs, tag = 'smem constant byte address 0x4 - core index']
  #allocation1 [shape = 'u32[144,128]{1,0:T(1,128)}', space=vmem, size = 0x12000, scoped, tag = 'internal scratch']
  %s0 = inlined_call_operand.hbm [shape: f32[8,400], index: 0, kind: input, shape index: {}]
  %s1 = inlined_call_operand.hbm [shape: bf16[400,128], index: 1, kind: input, shape index: {}]
  %s2 = inlined_call_operand.vmem [shape: f32[1,128], index: 2, kind: input, shape index: {}]
  %s3 = inlined_call_operand.hbm [shape: f32[8,128], index: 3, kind: output, shape index: {}]
  %s4 = sld [smem:[#allocation0]]
  $region30: #{tpu_custom_call.1} parent=0
    _
  %s6 = ssub.s32 1, %s4
  %s7 = scalar_select 0, %s6, %s4
  $region1: #{tpu_custom_call.1} parent=0
    #allocation2 [shape = 'u8[16384]{0}', space=vmem, size = 0x4000, scoped, tag = 'input window, operand 0, single buffered']
    #allocation3 [shape = 's32[1]{0}', space=sflag, size = 0x4, scoped, tag = 'scoped memory for tpu_custom_call.1']
    #allocation4 [shape = 's32[1]{0}', space=sflag, size = 0x4, scoped, tag = 'scoped memory for tpu_custom_call.1']
    #allocation5 [shape = 'u8[102400]{0}', space=vmem, size = 0x19000, scoped, tag = 'input window, operand 1, single buffered']
    #allocation6 [shape = 's32[1]{0}', space=sflag, size = 0x4, scoped, tag = 'scoped memory for tpu_custom_call.1']
    #allocation7 [shape = 'u8[4096]{0}', space=vmem, size = 0x1000, scoped, tag = 'output window, operand 0, single buffered']
    %8 = vsyncpa [#allocation3], 0
    %9 = vsyncpa [#allocation6], 0
    %10 = vsyncpa [#allocation4], 0
    // Predicated region
    $region2: #{tpu_custom_call.1} parent=1 // pred_check
      _
    $region3: #{tpu_custom_call.1} parent=1 // pred_check_branch
      %12 = sbr.rel (0) target = $region5
    $region4: #{tpu_custom_call.1} parent=1 // pred_region
      %s14 = ssub.s32 512, 512
      %15 = vsyncadd [#allocation3], %s14
      %s17 = sshll.u32 [#allocation2], 4
      %s18 = int_to_ptr.vmem [resolvable:$true] %s17
      %20 = dma.hbm_to_vmem [thread:$0]  %s0, 512, %s18, [#allocation3]
    $region5: #{tpu_custom_call.1} parent=1 // pred_fallthru
      _
    // Predicated region
    $region6: #{tpu_custom_call.1} parent=1 // pred_check
      _
    $region7: #{tpu_custom_call.1} parent=1 // pred_check_branch
      %22 = sbr.rel (0) target = $region9
    $region8: #{tpu_custom_call.1} parent=1 // pred_region
      %s24 = ssub.s32 3200, 3200
      %25 = vsyncadd [#allocation6], %s24
      %s26 = sshll.u32 [#allocation5], 4
      %s27 = int_to_ptr.vmem [resolvable:$true] %s26
      %32 = dma.hbm_to_vmem [thread:$0]  %s1, 3200, %s27, [#allocation6], 64, 64, 4
    $region9: #{tpu_custom_call.1} parent=1 // pred_fallthru
      _
    // Predicated region
    $region10: #{tpu_custom_call.1} parent=1 // pred_check
      _
    $region11: #{tpu_custom_call.1} parent=1 // pred_check_branch
      %34 = sbr.rel (0) target = $region13
    $region12: #{tpu_custom_call.1} parent=1 // pred_region
      _
    $region13: #{tpu_custom_call.1} parent=1 // pred_fallthru
      _
    // Predicated region
    $region14: #{tpu_custom_call.1} parent=1 // pred_check
      _
    $region15: #{tpu_custom_call.1} parent=1 // pred_check_branch
      %36 = sbr.rel (0) target = $region17
    $region16: #{tpu_custom_call.1} parent=1 // pred_region
      %37 = dma.done [#allocation3], 512
    $region17: #{tpu_custom_call.1} parent=1 // pred_fallthru
      _
    // Predicated region
    $region18: #{tpu_custom_call.1} parent=1 // pred_check
      _
    $region19: #{tpu_custom_call.1} parent=1 // pred_check_branch
      %39 = sbr.rel (0) target = $region21
    $region20: #{tpu_custom_call.1} parent=1 // pred_region
      %40 = dma.done [#allocation6], 3200
    $region21: #{tpu_custom_call.1} parent=1 // pred_fallthru
      _
    %v42 = vld [vmem:[#allocation2] sm:$0xff]
    %v43 = vld [vmem:[#allocation2 + $0x8] sm:$0xff]
    %v44 = vld [vmem:[#allocation2 + $0x10] sm:$0xff]
    %v45 = vld [vmem:[#allocation2 + $0x18] sm:$0xff]
    %v46 = vpack.c.bf16 %v42, %v42
    %v47 = vpack.c.bf16 %v43, %v43
    %v48 = vpack.c.bf16 %v44, %v44
    %v49 = vpack.c.bf16 %v45, %v45
    %v50 = vld [vmem:[#allocation5] sm:$0xf]
    %v51 = vld [vmem:[#allocation5 + $0x4] sm:$0xf]
    %v52 = vld [vmem:[#allocation5 + $0x8] sm:$0xf]
    %v53 = vld [vmem:[#allocation5 + $0xc] sm:$0xf]
    %v54 = vld [vmem:[#allocation5 + $0x10] sm:$0xf]
    %v55 = vld [vmem:[#allocation5 + $0x14] sm:$0xf]
    %v56 = vld [vmem:[#allocation5 + $0x18] sm:$0xf]
    %v57 = vld [vmem:[#allocation5 + $0x1c] sm:$0xf]
    %v58 = vld [vmem:[#allocation5 + $0x20] sm:$0xf]
    %v59 = vld [vmem:[#allocation5 + $0x24] sm:$0xf]
    %v60 = vld [vmem:[#allocation5 + $0x28] sm:$0xf]
    %v61 = vld [vmem:[#allocation5 + $0x2c] sm:$0xf]
    %v62 = vld [vmem:[#allocation5 + $0x30] sm:$0xf]
    %v63 = vld [vmem:[#allocation5 + $0x34] sm:$0xf]
    %v64 = vld [vmem:[#allocation5 + $0x38] sm:$0xf]
    %v65 = vld [vmem:[#allocation5 + $0x3c] sm:$0xf]
    %v66 = vld [vmem:[#allocation5 + $0x40] sm:$0xf]
    %v67 = vld [vmem:[#allocation5 + $0x44] sm:$0xf]
    %v68 = vld [vmem:[#allocation5 + $0x48] sm:$0xf]
    %v69 = vld [vmem:[#allocation5 + $0x4c] sm:$0xf]
    %v70 = vld [vmem:[#allocation5 + $0x50] sm:$0xf]
    %v71 = vld [vmem:[#allocation5 + $0x54] sm:$0xf]
    %v72 = vld [vmem:[#allocation5 + $0x58] sm:$0xf]
    %v73 = vld [vmem:[#allocation5 + $0x5c] sm:$0xf]
    %v74 = vld [vmem:[#allocation5 + $0x60] sm:$0xf]
    %v75 = vld [vmem:[#allocation5 + $0x64] sm:$0xf]
    %v76 = vld [vmem:[#allocation5 + $0x68] sm:$0xf]
    %v77 = vld [vmem:[#allocation5 + $0x6c] sm:$0xf]
    %v78 = vld [vmem:[#allocation5 + $0x70] sm:$0xf]
    %v79 = vld [vmem:[#allocation5 + $0x74] sm:$0xf]
    %v80 = vld [vmem:[#allocation5 + $0x78] sm:$0xf]
    %v81 = vld [vmem:[#allocation5 + $0x7c] sm:$0xf]
    %v82 = vld [vmem:[#allocation5 + $0x80] sm:$0xf]
    %v83 = vld [vmem:[#allocation5 + $0x84] sm:$0xf]
    %v84 = vld [vmem:[#allocation5 + $0x88] sm:$0xf]
    %v85 = vld [vmem:[#allocation5 + $0x8c] sm:$0xf]
    %v86 = vld [vmem:[#allocation5 + $0x90] sm:$0xf]
    %v87 = vld [vmem:[#allocation5 + $0x94] sm:$0xf]
    %v88 = vld [vmem:[#allocation5 + $0x98] sm:$0xf]
    %v89 = vld [vmem:[#allocation5 + $0x9c] sm:$0xf]
    %v90 = vld [vmem:[#allocation5 + $0xa0] sm:$0xf]
    %v91 = vld [vmem:[#allocation5 + $0xa4] sm:$0xf]
    %v92 = vld [vmem:[#allocation5 + $0xa8] sm:$0xf]
    %v93 = vld [vmem:[#allocation5 + $0xac] sm:$0xf]
    %v94 = vld [vmem:[#allocation5 + $0xb0] sm:$0xf]
    %v95 = vld [vmem:[#allocation5 + $0xb4] sm:$0xf]
    %v96 = vld [vmem:[#allocation5 + $0xb8] sm:$0xf]
    %v97 = vld [vmem:[#allocation5 + $0xbc] sm:$0xf]
    %v98 = vld [vmem:[#allocation5 + $0xc0] sm:$0xf]
    %v99 = vld [vmem:[#allocation5 + $0xc4] sm:$0xf]
    %v100 = vld [vmem:[%s2] sm:$0x1]
    %v102 = vlaneseq
    %v103 = vshrl.u32 %v102, 7
    %v104 = vsub.s32 0, %v103
    %v105 = vrot.slane %v100, %v104
    %v157 = vunpack.c.l.b16 %v50
    %v158 = vunpack.c.l.b16 %v51
    %v159 = vunpack.c.l.b16 %v52
    %v160 = vunpack.c.l.b16 %v53
    %v161 = vunpack.c.l.b16 %v54
    %v162 = vunpack.c.l.b16 %v55
    %v163 = vunpack.c.l.b16 %v56
    %v164 = vunpack.c.l.b16 %v57
    %v165 = vunpack.c.l.b16 %v58
    %v166 = vunpack.c.l.b16 %v59
    %v167 = vunpack.c.l.b16 %v60
    %v168 = vunpack.c.l.b16 %v61
    %v169 = vunpack.c.l.b16 %v62
    %v170 = vunpack.c.l.b16 %v63
    %v171 = vunpack.c.l.b16 %v64
    %v172 = vunpack.c.l.b16 %v65
    %v173 = vunpack.c.l.b16 %v66
    %v174 = vunpack.c.l.b16 %v67
    %v175 = vunpack.c.l.b16 %v68
    %v176 = vunpack.c.l.b16 %v69
    %v177 = vunpack.c.l.b16 %v70
    %v178 = vunpack.c.l.b16 %v71
    %v179 = vunpack.c.l.b16 %v72
    %v180 = vunpack.c.l.b16 %v73
    %v181 = vunpack.c.l.b16 %v74
    %v182 = vunpack.c.l.b16 %v75
    %v183 = vunpack.c.l.b16 %v76
    %v184 = vunpack.c.l.b16 %v77
    %v185 = vunpack.c.l.b16 %v78
    %v186 = vunpack.c.l.b16 %v79
    %v187 = vunpack.c.l.b16 %v80
    %v188 = vunpack.c.l.b16 %v81
    %v189 = vunpack.c.l.b16 %v82
    %v190 = vunpack.c.l.b16 %v83
    %v191 = vunpack.c.l.b16 %v84
    %v192 = vunpack.c.l.b16 %v85
    %v193 = vunpack.c.l.b16 %v86
    %v194 = vunpack.c.l.b16 %v87
    %v195 = vunpack.c.l.b16 %v88
    %v196 = vunpack.c.l.b16 %v89
    %v197 = vunpack.c.l.b16 %v90
    %v198 = vunpack.c.l.b16 %v91
    %v199 = vunpack.c.l.b16 %v92
    %v200 = vunpack.c.l.b16 %v93
    %v201 = vunpack.c.l.b16 %v94
    %v202 = vunpack.c.l.b16 %v95
    %v203 = vunpack.c.l.b16 %v96
    %v204 = vunpack.c.l.b16 %v97
    %v205 = vunpack.c.l.b16 %v98
    %v206 = vunpack.c.l.b16 %v99
    %v207 = vpack.c.b16 %v158, %v157
    %v208 = vpack.c.b16 %v160, %v159
    %v209 = vpack.c.b16 %v162, %v161
    %v210 = vpack.c.b16 %v164, %v163
    %v211 = vpack.c.b16 %v166, %v165
    %v212 = vpack.c.b16 %v168, %v167
    %v213 = vpack.c.b16 %v170, %v169
    %v214 = vpack.c.b16 %v172, %v171
    %v215 = vpack.c.b16 %v174, %v173
    %v216 = vpack.c.b16 %v176, %v175
    %v217 = vpack.c.b16 %v178, %v177
    %v218 = vpack.c.b16 %v180, %v179
    %v219 = vpack.c.b16 %v182, %v181
    %v220 = vpack.c.b16 %v184, %v183
    %v221 = vpack.c.b16 %v186, %v185
    %v222 = vpack.c.b16 %v188, %v187
    %v223 = vpack.c.b16 %v190, %v189
    %v224 = vpack.c.b16 %v192, %v191
    %v225 = vpack.c.b16 %v194, %v193
    %v226 = vpack.c.b16 %v196, %v195
    %v227 = vpack.c.b16 %v198, %v197
    %v228 = vpack.c.b16 %v200, %v199
    %v229 = vpack.c.b16 %v202, %v201
    %v230 = vpack.c.b16 %v204, %v203
    %v231 = vpack.c.b16 %v206, %v205
    %vm257 = vcmask 130048
    %v259 = vsel %vm257, %v49, 0
    %261 = vmatprep.subr.bf16.mxu0 0
    %262 = vmatpush1.bf16.msra.mxu0 %v207
    %263 = vmatprep.subr.bf16.mxu0 0
    %264 = vmatpush1.bf16.msra.mxu0 %v208
    %265 = vmatprep.subr.bf16.mxu0 0
    %266 = vmatpush1.bf16.msra.mxu0 %v209
    %267 = vmatprep.subr.bf16.mxu0 0
    %268 = vmatpush1.bf16.msra.mxu0 %v210
    %269 = vmatprep.subr.bf16.mxu0 0
    %270 = vmatpush1.bf16.msra.mxu0 %v211
    %271 = vmatprep.subr.bf16.mxu0 0
    %272 = vmatpush1.bf16.msra.mxu0 %v212
    %273 = vmatprep.subr.bf16.mxu0 0
    %274 = vmatpush1.bf16.msra.mxu0 %v213
    %275 = vmatprep.subr.bf16.mxu0 0
    %276 = vmatpush1.bf16.msra.mxu0 %v214
    %277 = vmatprep.subr.bf16.mxu0 0
    %278 = vmatpush1.bf16.msra.mxu0 %v215
    %279 = vmatprep.subr.bf16.mxu0 0
    %280 = vmatpush1.bf16.msra.mxu0 %v216
    %281 = vmatprep.subr.bf16.mxu0 0
    %282 = vmatpush1.bf16.msra.mxu0 %v217
    %283 = vmatprep.subr.bf16.mxu0 0
    %284 = vmatpush1.bf16.msra.mxu0 %v218
    %285 = vmatprep.subr.bf16.mxu0 0
    %286 = vmatpush1.bf16.msra.mxu0 %v219
    %287 = vmatprep.subr.bf16.mxu0 0
    %288 = vmatpush1.bf16.msra.mxu0 %v220
    %289 = vmatprep.subr.bf16.mxu0 0
    %290 = vmatpush1.bf16.msra.mxu0 %v221
    %291 = vmatprep.subr.bf16.mxu0 0
    %292 = vmatpush1.bf16.msra.mxu0 %v222
    %293 = vmatprep.mubr.bf16.mxu0 %v47
    %294 = vmatmul.mubr.bf16.gmra.mrb[0].mxu0 %v46
    %v295 = vpop.f32.mrb[0].mxu0
    %v296 = vadd.f32 %v105, %v295
    %v297 = vpop.f32.mrb[0].mxu0
    %v298 = vpop.f32.mrb[0].mxu0
    %v299 = vpop.f32.mrb[0].mxu0
    %300 = vdwg.mxu0
    %301 = vmatprep.subr.bf16.mxu0 0
    %302 = vmatpush1.bf16.msra.mxu0 %v223
    %303 = vmatprep.subr.bf16.mxu0 0
    %304 = vmatpush1.bf16.msra.mxu0 %v224
    %305 = vmatprep.subr.bf16.mxu0 0
    %306 = vmatpush1.bf16.msra.mxu0 %v225
    %307 = vmatprep.subr.bf16.mxu0 0
    %308 = vmatpush1.bf16.msra.mxu0 %v226
    %309 = vmatprep.subr.bf16.mxu0 0
    %310 = vmatpush1.bf16.msra.mxu0 %v227
    %311 = vmatprep.subr.bf16.mxu0 0
    %312 = vmatpush1.bf16.msra.mxu0 %v228
    %313 = vmatprep.subr.bf16.mxu0 0
    %314 = vmatpush1.bf16.msra.mxu0 %v229
    %315 = vmatprep.subr.bf16.mxu0 0
    %316 = vmatpush1.bf16.msra.mxu0 %v230
    %317 = vmatprep.subr.bf16.mxu0 0
    %318 = vmatpush1.bf16.msra.mxu0 %v231
    %319 = vmatprep.subr.bf16.mxu0 0
    %320 = vmatpush1.bf16.msra.mxu0 0
    %321 = vmatprep.subr.bf16.mxu0 0
    %322 = vmatpush1.bf16.msra.mxu0 0
    %323 = vmatprep.subr.bf16.mxu0 0
    %324 = vmatpush1.bf16.msra.mxu0 0
    %325 = vmatprep.subr.bf16.mxu0 0
    %326 = vmatpush1.bf16.msra.mxu0 0
    %327 = vmatprep.subr.bf16.mxu0 0
    %328 = vmatpush1.bf16.msra.mxu0 0
    %329 = vmatprep.subr.bf16.mxu0 0
    %330 = vmatpush1.bf16.msra.mxu0 0
    %331 = vmatprep.subr.bf16.mxu0 0
    %332 = vmatpush1.bf16.msra.mxu0 0
    %333 = vmatprep.mubr.bf16.mxu0 %v259
    %334 = vmatmul.mubr.bf16.gmra.mrb[0].mxu0 %v48
    %v335 = vpop.f32.mrb[0].mxu0
    %v336 = vadd.f32 %v296, %v335
    %v337 = vpop.f32.mrb[0].mxu0
    %v338 = vpop.f32.mrb[0].mxu0
    %v339 = vpop.f32.mrb[0].mxu0
    %340 = vdwg.mxu0
    %341 = vmax.xlane.f32.xlu0 %v336
    %v342 = vpop.xlane.xlu0 %341
    %v343 = vsub.f32 %v336, %v342
    %v344 = vmul.f32 %v343, 1.442695
    %v345 = vpow.pop %v344
    %346 = vadd.xlane.f32.xlu0 %v345
    %v347 = vpop.xlane.xlu0 %346
    %v348 = vlog2.pop %v347
    %v349 = vmul.f32 %v348, 0.6931472
    %v350 = vsub.f32 %v343, %v349
    %351 = vst [vmem:[#allocation7] sm:$0xff] %v350
    // Predicated region
    $region22: #{tpu_custom_call.1} parent=1 // pred_check
      _
    $region23: #{tpu_custom_call.1} parent=1 // pred_check_branch
      %353 = sbr.rel (0) target = $region25
    $region24: #{tpu_custom_call.1} parent=1 // pred_region
      %s355 = ssub.s32 128, 128
      %356 = vsyncadd [#allocation4], %s355
      %s358 = sshll.u32 [#allocation7], 4
      %s359 = int_to_ptr.vmem [resolvable:$true] %s358
      %361 = dma.vmem_to_hbm [thread:$0]  %s359, 128, %s3, [#allocation4]
    $region25: #{tpu_custom_call.1} parent=1 // pred_fallthru
      _
    // Predicated region
    $region26: #{tpu_custom_call.1} parent=1 // pred_check
      _
    $region27: #{tpu_custom_call.1} parent=1 // pred_check_branch
      %363 = sbr.rel (0) target = $region29
    $region28: #{tpu_custom_call.1} parent=1 // pred_region
      %364 = dma.done [#allocation4], 128
    $region29: #{tpu_custom_call.1} parent=1 // pred_fallthru
      _
    %365 = vsyncpa [#allocation3], 1
    %366 = vsyncpa [#allocation6], 1
    %367 = vsyncpa [#allocation4], 1

</llo_original>
